<compile_context>
chip_gen: v7x
topology: tpu7x:2x2x1
jax: 0.10.0
libtpu: 0.0.40
codegen_flags: <defaults>
</compile_context>

<pallas_src>
import jax
import jax.numpy as jnp
from jax.experimental import pallas as pl
from jax.experimental.pallas import tpu as pltpu


def _round_up(x, m):
    return ((x + m - 1) // m) * m


def _image_fusion_kernel(alpha_ref, halo_ref, fore_ref, back_ref, out_ref, win_ref):
    """One H-slab: separable 3x3 box-blur of alpha + alpha blend + *255, all in VMEM."""
    C, TH, W = fore_ref.shape

    # Assemble the (TH+2)-row blur window: [top halo row; TH alpha rows; bottom halo row].
    win_ref[1:TH + 1, :] = alpha_ref[...].astype(jnp.float32)
    win_ref[0:1, :] = halo_ref[0, 0:1, :].astype(jnp.float32)
    win_ref[TH + 1:TH + 2, :] = halo_ref[0, 1:2, :].astype(jnp.float32)
    win = win_ref[...]                                        # (TH+2, Wp)

    # Separable 3x3 box *sum* (the 1/9 scaling is folded into the 255 constant below).
    v = win[0:TH, :] + win[1:TH + 1, :] + win[2:TH + 2, :]    # (TH, Wp)  vertical taps
    s = v[:, 0:W] + v[:, 1:W + 1] + v[:, 2:W + 2]             # (TH, W)   horizontal taps

    fore = fore_ref[...].astype(jnp.float32)                  # cast in VMEM, not in HBM
    back = back_ref[...].astype(jnp.float32)
    a255 = (s * (255.0 / 9.0))[None, :, :]                    # 255 * blurred alpha
    # 255*(blur*fore + (1-blur)*back) == 255*back + (255*blur)*(fore - back)
    out_ref[...] = back * 255.0 + a255 * (fore - back)


def _vmem_limit_bytes():
    """~90% of per-core physical VMEM, capped at 100 MiB (v7x=64MiB, v5e/v6e=128MiB)."""
    cap = 64 * 2**20  # conservative default (v7x per-TC)
    try:
        info = pltpu.get_tpu_info()
        cap = int(getattr(info, "vmem_capacity_bytes", cap))
    except Exception:
        pass
    return int(min(cap * 0.9, 100 * 2**20))


def _vmem_need_bytes(th, W, Wp, C, in_bytes, a_bytes):
    slab = C * th * W
    fore_back = 2 * 2 * slab * in_bytes          # double-buffered fore + back
    out = 2 * slab * 4                           # double-buffered f32 output
    alpha = 2 * th * Wp * a_bytes + 2 * 2 * Wp * a_bytes
    win = (th + 2) * Wp * 4                      # scratch window
    temps = 3 * slab * 4 + 4 * th * Wp * 4       # f32 casts / blend / blur temporaries
    return fore_back + out + alpha + win + temps


def _pick_tile_rows(H, W, Wp, C, in_bytes, a_bytes, budget):
    """Largest TH (multiple of 8, <=512) fitting the budget; force >=2 slabs when H>8."""
    hi = min(_round_up(H, 8), 512)
    best, th = 8, 8
    while th <= hi:
        if _vmem_need_bytes(th, W, Wp, C, in_bytes, a_bytes) <= budget:
            best = th
        th += 8
    if H > best:
        return best
    if H > 8:  # single-slab case: split so v7x's two TensorCores both get work
        best = min(best, _round_up(pl.cdiv(H, 2), 8))
    return best


def image_fusion(fore_tensor, back_tensor, alpha_tensor, *, tile_rows=None,
                 channels_last=True):
    """fore/back: (1, C, H, W); alpha: (1, 1, H, W).  Any float/int dtype (cast in-kernel).
    Returns (H, W, C) float32 (module semantics) or (C, H, W) if channels_last=False."""
    N, C, H, W = fore_tensor.shape
    assert N == 1, "ImageFusion.forward's squeeze().permute(1,2,0) requires batch == 1"
    assert back_tensor.shape == (1, C, H, W)
    assert alpha_tensor.shape == (1, 1, H, W)

    in_bytes = jnp.dtype(fore_tensor.dtype).itemsize
    a_bytes = jnp.dtype(alpha_tensor.dtype).itemsize
    Wp = _round_up(W + 2, 128)                   # lane-aligned padded alpha width

    vmem_limit = _vmem_limit_bytes()
    if tile_rows is None:
        TH = _pick_tile_rows(H, W, Wp, C, in_bytes, a_bytes,
                             budget=int(vmem_limit * 0.8))
    else:
        TH = tile_rows
    assert TH >= 8 and TH % 8 == 0, "tile_rows must be a positive multiple of 8"
    TH = min(TH, _round_up(H, 8))
    n_tiles = pl.cdiv(H, TH)                     # ragged last slab allowed
    Hp = n_tiles * TH

    # --- alpha prep (tiny, single channel): column-pad to lane width (zero left/right
    # halo), row-pad to the tiled extent, plus a per-slab halo array with the +-1 rows.
    a2d = alpha_tensor[0, 0]
    a_main = jnp.zeros((Hp, Wp), a2d.dtype).at[0:H, 1:W + 1].set(a2d)
    starts = jnp.arange(n_tiles) * TH
    top_idx = starts - 1                         # alpha row just above each slab
    bot_idx = starts + TH                        # alpha row just below each slab
    zero_rows = jnp.zeros((n_tiles, Wp), a2d.dtype)
    top = jnp.where((top_idx >= 0)[:, None],
                    a_main[jnp.clip(top_idx, 0, Hp - 1)], zero_rows)
    bot = jnp.where((bot_idx < Hp)[:, None],
                    a_main[jnp.clip(bot_idx, 0, Hp - 1)], zero_rows)
    halo = jnp.stack([top, bot], axis=1)         # (n_tiles, 2, Wp)

    # fore/back stay in their source dtype; casting happens in VMEM inside the kernel.
    fore = fore_tensor[0]
    back = back_tensor[0]

    out_chw = pl.pallas_call(
        _image_fusion_kernel,
        out_shape=jax.ShapeDtypeStruct((C, H, W), jnp.float32),
        grid=(n_tiles,),
        in_specs=[
            pl.BlockSpec((TH, Wp), lambda i: (i, 0)),        # alpha slab (no halo)
            pl.BlockSpec((1, 2, Wp), lambda i: (i, 0, 0)),   # this slab's halo rows
            pl.BlockSpec((C, TH, W), lambda i: (0, i, 0)),   # fore slab
            pl.BlockSpec((C, TH, W), lambda i: (0, i, 0)),   # back slab
        ],
        out_specs=pl.BlockSpec((C, TH, W), lambda i: (0, i, 0)),
        scratch_shapes=[pltpu.VMEM((TH + 2, Wp), jnp.float32)],
        compiler_params=pltpu.CompilerParams(
            dimension_semantics=("parallel",),               # shard slabs across v7x's 2 TCs
            vmem_limit_bytes=vmem_limit,
        ),
    )(a_main, halo, fore, back)

    if not channels_last:
        return out_chw
    # TODO(synk): the module's squeeze().permute(1,2,0) (HWC, C=3 minor dim) has no
    # lane-dense in-kernel equivalent; it is a plain XLA transpose here.  Perf-critical
    # consumers should pass channels_last=False and consume CHW directly.
    return jnp.transpose(out_chw, (1, 2, 0))


def _reference(fore_tensor, back_tensor, alpha_tensor):
    """Pure-JAX reference mirroring the PyTorch module exactly (computed in f32)."""
    a = alpha_tensor[0, 0].astype(jnp.float32)
    H, W = a.shape
    ap = jnp.pad(a, ((1, 1), (1, 1)))
    blur = sum(ap[dy:dy + H, dx:dx + W] for dy in range(3) for dx in range(3)) / 9.0
    blur = blur[None, :, :]
    fore = fore_tensor[0].astype(jnp.float32)
    back = back_tensor[0].astype(jnp.float32)
    fused = blur * fore + (1.0 - blur) * back
    return jnp.transpose(fused, (1, 2, 0)) * 255.0


if __name__ == "__main__":
    key = jax.random.PRNGKey(0)
    ks = jax.random.split(key, 9)

    # Case 1: small f32 image, auto-picked slabs (>=2 so both v7x TensorCores get work).
    C, H, W = 3, 16, 16
    fore = jax.random.uniform(ks[0], (1, C, H, W), dtype=jnp.float32)
    back = jax.random.uniform(ks[1], (1, C, H, W), dtype=jnp.float32)
    alpha = jax.random.uniform(ks[2], (1, 1, H, W), dtype=jnp.float32)
    out = image_fusion(fore, back, alpha)
    jax.block_until_ready(out)
    ref = _reference(fore, back, alpha)
    assert out.shape == (H, W, C), out.shape
    assert jnp.allclose(out, ref, atol=1e-4, rtol=1e-4), "mismatch (f32, auto tiles)"

    # Case 2: bf16 inputs (cast to f32 inside the kernel), forced 16-row slabs,
    # CHW output path (no trailing HWC transpose).
    C2, H2, W2 = 3, 64, 128
    fore2 = jax.random.uniform(ks[3], (1, C2, H2, W2), dtype=jnp.float32).astype(jnp.bfloat16)
    back2 = jax.random.uniform(ks[4], (1, C2, H2, W2), dtype=jnp.float32).astype(jnp.bfloat16)
    alpha2 = jax.random.uniform(ks[5], (1, 1, H2, W2), dtype=jnp.float32).astype(jnp.bfloat16)
    out2 = image_fusion(fore2, back2, alpha2, tile_rows=16, channels_last=False)
    jax.block_until_ready(out2)
    ref2 = jnp.transpose(_reference(fore2, back2, alpha2), (2, 0, 1))
    assert out2.shape == (C2, H2, W2), out2.shape
    assert jnp.allclose(out2, ref2, atol=1e-4, rtol=1e-4), "mismatch (bf16, CHW)"

    # Case 3: H not divisible by the slab height -> ragged last slab path.
    C3, H3, W3 = 3, 40, 96
    fore3 = jax.random.uniform(ks[6], (1, C3, H3, W3), dtype=jnp.float32)
    back3 = jax.random.uniform(ks[7], (1, C3, H3, W3), dtype=jnp.float32)
    alpha3 = jax.random.uniform(ks[8], (1, 1, H3, W3), dtype=jnp.float32)
    out3 = image_fusion(fore3, back3, alpha3, tile_rows=16)
    jax.block_until_ready(out3)
    ref3 = _reference(fore3, back3, alpha3)
    assert out3.shape == (H3, W3, C3), out3.shape
    assert jnp.allclose(out3, ref3, atol=1e-4, rtol=1e-4), "mismatch (ragged slabs)"

    print("KERNEL_OK")
</pallas_src>

<mosaic_0001>
module attributes {stable_mosaic.version = 11 : i64} {
  func.func @_image_fusion_kernel(%arg0: i32, %arg1: memref<8x128xf32, #tpu.memory_space<vmem>>, %arg2: memref<1x2x128xf32, #tpu.memory_space<vmem>>, %arg3: memref<3x8x16xf32, #tpu.memory_space<vmem>>, %arg4: memref<3x8x16xf32, #tpu.memory_space<vmem>>, %arg5: memref<3x8x16xf32, #tpu.memory_space<vmem>>, %arg6: memref<10x128xf32, #tpu.memory_space<vmem>>) attributes {dimension_semantics = [#tpu.dimension_semantics<parallel>], iteration_bounds = array<i64: 2>, scalar_prefetch = 0 : i64, scratch_operands = 1 : i64, tpu.core_type = #tpu.core_type<tc>, window_params = [{transform_indices = @transform_0, window_bounds = array<i64: 8, 128>}, {transform_indices = @transform_1, window_bounds = array<i64: 1, 2, 128>}, {transform_indices = @transform_2, window_bounds = array<i64: 3, 8, 16>}, {transform_indices = @transform_3, window_bounds = array<i64: 3, 8, 16>}, {transform_indices = @transform_4, window_bounds = array<i64: 3, 8, 16>}]} {
    %c0 = arith.constant 0 : index
    %c0_0 = arith.constant 0 : index
    %0 = vector.load %arg1[%c0, %c0_0] : memref<8x128xf32, #tpu.memory_space<vmem>>, vector<8x128xf32>
    %c1 = arith.constant 1 : index
    %c0_1 = arith.constant 0 : index
    %1 = vector.load %arg6[%c1, %c0_1] : memref<10x128xf32, #tpu.memory_space<vmem>>, vector<8x128xf32>
    tpu.vector_store %arg6[%c1, %c0_1], %0 {strides = array<i32>} : memref<10x128xf32, #tpu.memory_space<vmem>>, vector<8x128xf32>,
    %c0_2 = arith.constant 0 : index
    %c0_3 = arith.constant 0 : index
    %c0_4 = arith.constant 0 : index
    %2 = vector.load %arg2[%c0_2, %c0_3, %c0_4] : memref<1x2x128xf32, #tpu.memory_space<vmem>>, vector<1x1x128xf32>
    %3 = vector.shape_cast %2 : vector<1x1x128xf32> to vector<1x128xf32>
    %c0_5 = arith.constant 0 : index
    %c0_6 = arith.constant 0 : index
    %4 = vector.load %arg6[%c0_5, %c0_6] : memref<10x128xf32, #tpu.memory_space<vmem>>, vector<1x128xf32>
    tpu.vector_store %arg6[%c0_5, %c0_6], %3 {strides = array<i32>} : memref<10x128xf32, #tpu.memory_space<vmem>>, vector<1x128xf32>,
    %c0_7 = arith.constant 0 : index
    %c1_8 = arith.constant 1 : index
    %c0_9 = arith.constant 0 : index
    %5 = vector.load %arg2[%c0_7, %c1_8, %c0_9] : memref<1x2x128xf32, #tpu.memory_space<vmem>>, vector<1x1x128xf32>
    %6 = vector.shape_cast %5 : vector<1x1x128xf32> to vector<1x128xf32>
    %c9 = arith.constant 9 : index
    %c0_10 = arith.constant 0 : index
    %7 = vector.load %arg6[%c9, %c0_10] : memref<10x128xf32, #tpu.memory_space<vmem>>, vector<1x128xf32>
    tpu.vector_store %arg6[%c9, %c0_10], %6 {strides = array<i32>} : memref<10x128xf32, #tpu.memory_space<vmem>>, vector<1x128xf32>,
    %c0_11 = arith.constant 0 : index
    %c0_12 = arith.constant 0 : index
    %8 = vector.load %arg6[%c0_11, %c0_12] : memref<10x128xf32, #tpu.memory_space<vmem>>, vector<10x128xf32>
    %9 = vector.extract_strided_slice %8 {offsets = [0, 0], sizes = [8, 128], strides = [1, 1]} : vector<10x128xf32> to vector<8x128xf32>
    %10 = vector.extract_strided_slice %8 {offsets = [1, 0], sizes = [8, 128], strides = [1, 1]} : vector<10x128xf32> to vector<8x128xf32>
    %11 = arith.addf %9, %10 : vector<8x128xf32>
    %12 = vector.extract_strided_slice %8 {offsets = [2, 0], sizes = [8, 128], strides = [1, 1]} : vector<10x128xf32> to vector<8x128xf32>
    %13 = arith.addf %11, %12 : vector<8x128xf32>
    %14 = vector.extract_strided_slice %13 {offsets = [0, 0], sizes = [8, 16], strides = [1, 1]} : vector<8x128xf32> to vector<8x16xf32>
    %15 = vector.extract_strided_slice %13 {offsets = [0, 1], sizes = [8, 16], strides = [1, 1]} : vector<8x128xf32> to vector<8x16xf32>
    %16 = arith.addf %14, %15 : vector<8x16xf32>
    %17 = vector.extract_strided_slice %13 {offsets = [0, 2], sizes = [8, 16], strides = [1, 1]} : vector<8x128xf32> to vector<8x16xf32>
    %18 = arith.addf %16, %17 : vector<8x16xf32>
    %c0_13 = arith.constant 0 : index
    %c0_14 = arith.constant 0 : index
    %c0_15 = arith.constant 0 : index
    %19 = vector.load %arg3[%c0_13, %c0_14, %c0_15] : memref<3x8x16xf32, #tpu.memory_space<vmem>>, vector<3x8x16xf32>
    %c0_16 = arith.constant 0 : index
    %c0_17 = arith.constant 0 : index
    %c0_18 = arith.constant 0 : index
    %20 = vector.load %arg4[%c0_16, %c0_17, %c0_18] : memref<3x8x16xf32, #tpu.memory_space<vmem>>, vector<3x8x16xf32>
    %cst = arith.constant 28.333334 : f32
    %21 = vector.broadcast %cst : f32 to vector<8x16xf32>
    %22 = arith.mulf %18, %21 : vector<8x16xf32>
    %23 = vector.shape_cast %22 : vector<8x16xf32> to vector<1x8x16xf32>
    %cst_19 = arith.constant 2.550000e+02 : f32
    %24 = vector.broadcast %cst_19 : f32 to vector<3x8x16xf32>
    %25 = arith.mulf %20, %24 : vector<3x8x16xf32>
    %26 = arith.subf %19, %20 : vector<3x8x16xf32>
    %27 = vector.broadcast %23 : vector<1x8x16xf32> to vector<3x8x16xf32>
    %28 = arith.mulf %27, %26 : vector<3x8x16xf32>
    %29 = arith.addf %25, %28 : vector<3x8x16xf32>
    %c0_20 = arith.constant 0 : index
    %c0_21 = arith.constant 0 : index
    %c0_22 = arith.constant 0 : index
    %30 = vector.load %arg5[%c0_20, %c0_21, %c0_22] : memref<3x8x16xf32, #tpu.memory_space<vmem>>, vector<3x8x16xf32>
    tpu.vector_store %arg5[%c0_20, %c0_21, %c0_22], %29 {strides = array<i32>} : memref<3x8x16xf32, #tpu.memory_space<vmem>>, vector<3x8x16xf32>,
    return
  }
  func.func @transform_0(%arg0: i32) -> (i32, i32) {
    %c0_i32 = arith.constant 0 : i32
    %c0_i32_0 = arith.constant 0 : i32
    return %arg0, %c0_i32 : i32, i32
  }
  func.func @transform_1(%arg0: i32) -> (i32, i32, i32) {
    %c0_i32 = arith.constant 0 : i32
    %c0_i32_0 = arith.constant 0 : i32
    %c0_i32_1 = arith.constant 0 : i32
    return %arg0, %c0_i32, %c0_i32_0 : i32, i32, i32
  }
  func.func @transform_2(%arg0: i32) -> (i32, i32, i32) {
    %c0_i32 = arith.constant 0 : i32
    %c0_i32_0 = arith.constant 0 : i32
    %c0_i32_1 = arith.constant 0 : i32
    return %c0_i32, %arg0, %c0_i32_0 : i32, i32, i32
  }
  func.func @transform_3(%arg0: i32) -> (i32, i32, i32) {
    %c0_i32 = arith.constant 0 : i32
    %c0_i32_0 = arith.constant 0 : i32
    %c0_i32_1 = arith.constant 0 : i32
    return %c0_i32, %arg0, %c0_i32_0 : i32, i32, i32
  }
  func.func @transform_4(%arg0: i32) -> (i32, i32, i32) {
    %c0_i32 = arith.constant 0 : i32
    %c0_i32_0 = arith.constant 0 : i32
    %c0_i32_1 = arith.constant 0 : i32
    return %c0_i32, %arg0, %c0_i32_0 : i32, i32, i32
  }
}

</mosaic_0001>

<llo_original>
// kernel: tpu_custom_call.1
$region0: #{tpu_custom_call.1}
  #allocation0 [shape = 'u32[]', space=smem, size = 0x4, offset = 0x4, fixed_abs, tag = 'smem constant byte address 0x4 - core index']
  #allocation1 [shape = 'u32[144,128]{1,0:T(1,128)}', space=vmem, size = 0x12000, scoped, tag = 'internal scratch']
  #allocation2 [shape = 'f32[10,128]{1,0:T(8,128)}', space=vmem, size = 0x2000, scoped, tag = 'scratch operand']
  %s0 = inlined_call_operand.hbm [shape: f32[16,128], index: 0, kind: input, shape index: {}]
  %s1 = inlined_call_operand.hbm [shape: f32[2,2,128], index: 1, kind: input, shape index: {}]
  %s2 = inlined_call_operand.hbm [shape: f32[3,16,16], index: 2, kind: input, shape index: {}]
  %s3 = inlined_call_operand.hbm [shape: f32[3,16,16], index: 3, kind: input, shape index: {}]
  %s4 = inlined_call_operand.hbm [shape: f32[3,16,16], index: 4, kind: output, shape index: {}]
  %s5 = sld [smem:[#allocation0]]
  $region65: #{tpu_custom_call.1} parent=0
    _
  %s7 = ssub.s32 1, %s5
  %s8 = scalar_select 0, %s7, %s5
  $region1: #{tpu_custom_call.1} parent=0
    #allocation3 [shape = 'u8[8192]{0}', space=vmem, size = 0x2000, scoped, tag = 'input window, operand 0']
    #allocation4 [shape = 's32[2]{0}', space=sflag, size = 0x8, scoped, tag = 'scoped memory for tpu_custom_call.1']
    #allocation5 [shape = 's32[2]{0}', space=sflag, size = 0x8, scoped, tag = 'scoped memory for tpu_custom_call.1']
    #allocation6 [shape = 'u8[2048]{0}', space=vmem, size = 0x800, scoped, tag = 'input window, operand 1']
    #allocation7 [shape = 's32[2]{0}', space=sflag, size = 0x8, scoped, tag = 'scoped memory for tpu_custom_call.1']
    #allocation8 [shape = 'u8[24576]{0}', space=vmem, size = 0x6000, scoped, tag = 'input window, operand 2']
    #allocation9 [shape = 'u8[24576]{0}', space=vmem, size = 0x6000, scoped, tag = 'input window, operand 3']
    #allocation10 [shape = 's32[2]{0}', space=sflag, size = 0x8, scoped, tag = 'scoped memory for tpu_custom_call.1']
    #allocation11 [shape = 'u8[24576]{0}', space=vmem, size = 0x6000, scoped, tag = 'output window, operand 0']
    %9 = vsyncpa [#allocation4], 0
    %s10 = scalar_lea.sflag [#allocation4], 1
    %11 = vsyncpa %s10, 0
    %12 = vsyncpa [#allocation7], 0
    %s13 = scalar_lea.sflag [#allocation7], 1
    %14 = vsyncpa %s13, 0
    %15 = vsyncpa [#allocation10], 0
    %s16 = scalar_lea.sflag [#allocation10], 1
    %17 = vsyncpa %s16, 0
    %18 = vsyncpa [#allocation5], 0
    %s19 = scalar_lea.sflag [#allocation5], 1
    %20 = vsyncpa %s19, 0
    loop: start=0, step=1, limit=4
    $region2: #{tpu_custom_call.1} parent=1 // loop_pre_header
      _
    $region3: #{tpu_custom_call.1} parent=1 // loop_header
      %s22 = sphi 0, %s26
      %p23 = scmp.ge.s32.totalorder %s22, 4
      %s32 = sphi 0, %s34
      %s35 = sphi 0, %s32
      %s36 = sphi 0, %s35
      %s52 = sphi 0, %s36
      %s58 = sphi 0, %s60
      %s61 = sphi 0, %s58
      %s62 = sphi 0, %s61
      %s78 = sphi 0, %s62
      %s84 = sphi 0, %s86
      %s87 = sphi 0, %s84
      %s88 = sphi 0, %s87
      %s104 = sphi 0, %s88
      %s110 = sphi 0, %s112
      %s113 = sphi 0, %s110
      %s114 = sphi 0, %s113
      %s130 = sphi 0, %s114
      %s136 = sphi 0, %s138
      %s139 = sphi 0, %s136
      %s140 = sphi 0, %s139
      %s156 = sphi 0, %s140
    $region4: #{tpu_custom_call.1} parent=1 // loop_header_branch
      %25 = sbr.rel (%p23) target = $region8
    $region5: #{tpu_custom_call.1} parent=1 // loop_body
      %s27 = ssub.s32 %s22, 1
      %s28 = ssub.s32 %s22, 2
      %s29 = sadd.s32 %s22, 1
      %s30 = ssub.s32 %s22, %s29
      %p31 = scmp.eq.s32.totalorder %s30, 0
      %s33 = sadd.s32 %s32, 1
      %s34 = scalar_select %p31, %s32, %s33
      %p37 = pneg %p31
      %p38 = scmp.eq.s32.totalorder %s22, 1
      %p39 = por %p37, %p38
      %p40 = scmp.ne.s32.totalorder %s32, %s35
      %p41 = scmp.eq.s32.totalorder %s22, 0
      %p42 = por %p40, %p41
      %p43 = scmp.ne.s32.totalorder %s32, %s35
      %p44 = scmp.eq.s32.totalorder %s27, 1
      %p45 = por %p43, %p44
      %p46 = scmp.ne.s32.totalorder %s35, %s36
      %p47 = scmp.eq.s32.totalorder %s27, 0
      %p48 = por %p46, %p47
      %p49 = scmp.ne.s32.totalorder %s35, %s36
      %p50 = scmp.eq.s32.totalorder %s28, 1
      %p51 = por %p49, %p50
      %p53 = scmp.ne.s32.totalorder %s36, %s52
      %p54 = scmp.eq.s32.totalorder %s28, 0
      %p55 = por %p53, %p54
      %s56 = ssub.s32 %s22, %s29
      %p57 = scmp.eq.s32.totalorder %s56, 0
      %s59 = sadd.s32 %s58, 1
      %s60 = scalar_select %p57, %s58, %s59
      %p63 = pneg %p57
      %p64 = scmp.eq.s32.totalorder %s22, 1
      %p65 = por %p63, %p64
      %p66 = scmp.ne.s32.totalorder %s58, %s61
      %p67 = scmp.eq.s32.totalorder %s22, 0
      %p68 = por %p66, %p67
      %p69 = scmp.ne.s32.totalorder %s58, %s61
      %p70 = scmp.eq.s32.totalorder %s27, 1
      %p71 = por %p69, %p70
      %p72 = scmp.ne.s32.totalorder %s61, %s62
      %p73 = scmp.eq.s32.totalorder %s27, 0
      %p74 = por %p72, %p73
      %p75 = scmp.ne.s32.totalorder %s61, %s62
      %p76 = scmp.eq.s32.totalorder %s28, 1
      %p77 = por %p75, %p76
      %p79 = scmp.ne.s32.totalorder %s62, %s78
      %p80 = scmp.eq.s32.totalorder %s28, 0
      %p81 = por %p79, %p80
      %s82 = ssub.s32 %s22, %s29
      %p83 = scmp.eq.s32.totalorder %s82, 0
      %s85 = sadd.s32 %s84, 1
      %s86 = scalar_select %p83, %s84, %s85
      %p89 = pneg %p83
      %p90 = scmp.eq.s32.totalorder %s22, 1
      %p91 = por %p89, %p90
      %p92 = scmp.ne.s32.totalorder %s84, %s87
      %p93 = scmp.eq.s32.totalorder %s22, 0
      %p94 = por %p92, %p93
      %p95 = scmp.ne.s32.totalorder %s84, %s87
      %p96 = scmp.eq.s32.totalorder %s27, 1
      %p97 = por %p95, %p96
      %p98 = scmp.ne.s32.totalorder %s87, %s88
      %p99 = scmp.eq.s32.totalorder %s27, 0
      %p100 = por %p98, %p99
      %p101 = scmp.ne.s32.totalorder %s87, %s88
      %p102 = scmp.eq.s32.totalorder %s28, 1
      %p103 = por %p101, %p102
      %p105 = scmp.ne.s32.totalorder %s88, %s104
      %p106 = scmp.eq.s32.totalorder %s28, 0
      %p107 = por %p105, %p106
      %s108 = ssub.s32 %s22, %s29
      %p109 = scmp.eq.s32.totalorder %s108, 0
      %s111 = sadd.s32 %s110, 1
      %s112 = scalar_select %p109, %s110, %s111
      %p115 = pneg %p109
      %p116 = scmp.eq.s32.totalorder %s22, 1
      %p117 = por %p115, %p116
      %p118 = scmp.ne.s32.totalorder %s110, %s113
      %p119 = scmp.eq.s32.totalorder %s22, 0
      %p120 = por %p118, %p119
      %p121 = scmp.ne.s32.totalorder %s110, %s113
      %p122 = scmp.eq.s32.totalorder %s27, 1
      %p123 = por %p121, %p122
      %p124 = scmp.ne.s32.totalorder %s113, %s114
      %p125 = scmp.eq.s32.totalorder %s27, 0
      %p126 = por %p124, %p125
      %p127 = scmp.ne.s32.totalorder %s113, %s114
      %p128 = scmp.eq.s32.totalorder %s28, 1
      %p129 = por %p127, %p128
      %p131 = scmp.ne.s32.totalorder %s114, %s130
      %p132 = scmp.eq.s32.totalorder %s28, 0
      %p133 = por %p131, %p132
      %s134 = ssub.s32 %s22, %s29
      %p135 = scmp.eq.s32.totalorder %s134, 0
      %s137 = sadd.s32 %s136, 1
      %s138 = scalar_select %p135, %s136, %s137
      %p141 = pneg %p135
      %p142 = scmp.eq.s32.totalorder %s22, 1
      %p143 = por %p141, %p142
      %p144 = scmp.ne.s32.totalorder %s136, %s139
      %p145 = scmp.eq.s32.totalorder %s22, 0
      %p146 = por %p144, %p145
      %p147 = scmp.ne.s32.totalorder %s136, %s139
      %p148 = scmp.eq.s32.totalorder %s27, 1
      %p149 = por %p147, %p148
      %p150 = scmp.ne.s32.totalorder %s139, %s140
      %p151 = scmp.eq.s32.totalorder %s27, 0
      %p152 = por %p150, %p151
      %p153 = scmp.ne.s32.totalorder %s139, %s140
      %p154 = scmp.eq.s32.totalorder %s28, 1
      %p155 = por %p153, %p154
      %p157 = scmp.ne.s32.totalorder %s140, %s156
      %p158 = scmp.eq.s32.totalorder %s28, 0
      %p159 = por %p157, %p158
      %p160 = scmp.le.s32.totalorder 1, %s22
      %p161 = scmp.lt.s32.totalorder %s22, 3
      %p162 = pnand %p160, %p161
      %p163 = pneg %p162
      // Predicated region
      $region9: #{tpu_custom_call.1} parent=5 // pred_check
        _
      $region10: #{tpu_custom_call.1} parent=5 // pred_check_branch
        %165 = sbr.rel (%p162) target = $region12
      $region11: #{tpu_custom_call.1} parent=5 // pred_region
        %s166 = ssub.s32 %s22, 1
      $region12: #{tpu_custom_call.1} parent=5 // pred_fallthru
        _
      %p167 = scmp.lt.s32.totalorder %s22, 2
      // Predicated region
      $region13: #{tpu_custom_call.1} parent=5 // pred_check
        %p168 = pneg %p167
      $region14: #{tpu_custom_call.1} parent=5 // pred_check_branch
        %170 = sbr.rel (%p168) target = $region16
      $region15: #{tpu_custom_call.1} parent=5 // pred_region
        // Predicated region
        $region17: #{tpu_custom_call.1} parent=15 // pred_check
          %p171 = pneg %p42
        $region18: #{tpu_custom_call.1} parent=15 // pred_check_branch
          %173 = sbr.rel (%p171) target = $region20
        $region19: #{tpu_custom_call.1} parent=15 // pred_region
          %s174 = sand.u32 %s32, 1
          %s175 = scalar_lea.sflag [#allocation4], %s174
          %s176 = sand.u32 %s32, 1
          %s177 = smul.addr %s176, 8
          %s178 = scalar_lea.vmem [#allocation3], %s177
          %s180 = ssub.s32 128, 128
          %181 = vsyncadd %s175, %s180
          %s182 = smul.addr %s22, 128
          %s183 = scalar_lea.hbm %s0, %s182
          %s185 = sshll.u32 %s178, 4
          %s186 = int_to_ptr.vmem [resolvable:$true] %s185
          %188 = dma.hbm_to_vmem [thread:$0]  %s183, 128, %s186, %s175
        $region20: #{tpu_custom_call.1} parent=15 // pred_fallthru
          _
        // Predicated region
        $region21: #{tpu_custom_call.1} parent=15 // pred_check
          %p189 = pneg %p68
        $region22: #{tpu_custom_call.1} parent=15 // pred_check_branch
          %191 = sbr.rel (%p189) target = $region24
        $region23: #{tpu_custom_call.1} parent=15 // pred_region
          %s192 = sand.u32 %s22, 1
          %s193 = scalar_lea.sflag [#allocation7], %s192
          %s194 = sand.u32 %s58, 1
          %s195 = smul.addr %s194, 2
          %s196 = scalar_lea.vmem [#allocation6], %s195
          %s198 = ssub.s32 32, 32
          %199 = vsyncadd %s193, %s198
          %s200 = smul.addr %s22, 32
          %s201 = scalar_lea.hbm %s1, %s200
          %s203 = sshll.u32 %s196, 4
          %s204 = int_to_ptr.vmem [resolvable:$true] %s203
          %206 = dma.hbm_to_vmem [thread:$0]  %s201, 32, %s204, %s193
        $region24: #{tpu_custom_call.1} parent=15 // pred_fallthru
          _
        // Predicated region
        $region25: #{tpu_custom_call.1} parent=15 // pred_check
          %p207 = pneg %p94
        $region26: #{tpu_custom_call.1} parent=15 // pred_check_branch
          %209 = sbr.rel (%p207) target = $region28
        $region27: #{tpu_custom_call.1} parent=15 // pred_region
          %s210 = sand.u32 %s22, 1
          %s211 = scalar_lea.sflag [#allocation7], %s210
          %s212 = sand.u32 %s84, 1
          %s213 = smul.addr %s212, 24
          %s214 = scalar_lea.vmem [#allocation8], %s213
          %s216 = ssub.s32 384, 384
          %217 = vsyncadd %s211, %s216
          %s218 = smul.addr %s22, 128
          %s219 = scalar_lea.hbm %s2, %s218
          %s220 = sshll.u32 %s214, 4
          %s221 = int_to_ptr.vmem [resolvable:$true] %s220
          %226 = dma.hbm_to_vmem [thread:$0]  %s219, 384, %s221, %s211, 256, 128, 8
        $region28: #{tpu_custom_call.1} parent=15 // pred_fallthru
          _
        // Predicated region
        $region29: #{tpu_custom_call.1} parent=15 // pred_check
          %p227 = pneg %p120
        $region30: #{tpu_custom_call.1} parent=15 // pred_check_branch
          %229 = sbr.rel (%p227) target = $region32
        $region31: #{tpu_custom_call.1} parent=15 // pred_region
          %s230 = sand.u32 %s110, 1
          %s231 = scalar_lea.sflag [#allocation10], %s230
          %s232 = sand.u32 %s110, 1
          %s233 = smul.addr %s232, 24
          %s234 = scalar_lea.vmem [#allocation9], %s233
          %s236 = ssub.s32 384, 384
          %237 = vsyncadd %s231, %s236
          %s238 = smul.addr %s22, 128
          %s239 = scalar_lea.hbm %s3, %s238
          %s240 = sshll.u32 %s234, 4
          %s241 = int_to_ptr.vmem [resolvable:$true] %s240
          %246 = dma.hbm_to_vmem [thread:$0]  %s239, 384, %s241, %s231, 256, 128, 8
        $region32: #{tpu_custom_call.1} parent=15 // pred_fallthru
          _
      $region16: #{tpu_custom_call.1} parent=5 // pred_fallthru
        _
      %p247 = scmp.le.s32.totalorder 1, %s22
      %p248 = scmp.lt.s32.totalorder %s22, 3
      %p249 = pnand %p247, %p248
      %p250 = pneg %p249
      // Predicated region
      $region33: #{tpu_custom_call.1} parent=5 // pred_check
        _
      $region34: #{tpu_custom_call.1} parent=5 // pred_check_branch
        %252 = sbr.rel (%p249) target = $region36
      $region35: #{tpu_custom_call.1} parent=5 // pred_region
        %s253 = ssub.s32 %s22, 1
        %s254 = sand.u32 %s35, 1
        %s255 = scalar_lea.sflag [#allocation4], %s254
        %s256 = sand.u32 %s35, 1
        %s257 = smul.addr %s256, 8
        %s258 = scalar_lea.vmem [#allocation3], %s257
        // Predicated region
        $region37: #{tpu_custom_call.1} parent=35 // pred_check
          %p259 = pneg %p48
        $region38: #{tpu_custom_call.1} parent=35 // pred_check_branch
          %261 = sbr.rel (%p259) target = $region40
        $region39: #{tpu_custom_call.1} parent=35 // pred_region
          %262 = dma.done %s255, 128
        $region40: #{tpu_custom_call.1} parent=35 // pred_fallthru
          _
        %s263 = sand.u32 %s27, 1
        %s264 = scalar_lea.sflag [#allocation7], %s263
        %s265 = sand.u32 %s61, 1
        %s266 = smul.addr %s265, 2
        %s267 = scalar_lea.vmem [#allocation6], %s266
        // Predicated region
        $region41: #{tpu_custom_call.1} parent=35 // pred_check
          %p268 = pneg %p74
        $region42: #{tpu_custom_call.1} parent=35 // pred_check_branch
          %270 = sbr.rel (%p268) target = $region44
        $region43: #{tpu_custom_call.1} parent=35 // pred_region
          %271 = dma.done %s264, 32
        $region44: #{tpu_custom_call.1} parent=35 // pred_fallthru
          _
        %s272 = sand.u32 %s27, 1
        %s273 = scalar_lea.sflag [#allocation7], %s272
        %s274 = sand.u32 %s87, 1
        %s275 = smul.addr %s274, 24
        %s276 = scalar_lea.vmem [#allocation8], %s275
        // Predicated region
        $region45: #{tpu_custom_call.1} parent=35 // pred_check
          %p277 = pneg %p100
        $region46: #{tpu_custom_call.1} parent=35 // pred_check_branch
          %279 = sbr.rel (%p277) target = $region48
        $region47: #{tpu_custom_call.1} parent=35 // pred_region
          %280 = dma.done %s273, 384
        $region48: #{tpu_custom_call.1} parent=35 // pred_fallthru
          _
        %s281 = sand.u32 %s113, 1
        %s282 = scalar_lea.sflag [#allocation10], %s281
        %s283 = sand.u32 %s113, 1
        %s284 = smul.addr %s283, 24
        %s285 = scalar_lea.vmem [#allocation9], %s284
        // Predicated region
        $region49: #{tpu_custom_call.1} parent=35 // pred_check
          %p286 = pneg %p126
        $region50: #{tpu_custom_call.1} parent=35 // pred_check_branch
          %288 = sbr.rel (%p286) target = $region52
        $region51: #{tpu_custom_call.1} parent=35 // pred_region
          %289 = dma.done %s282, 384
        $region52: #{tpu_custom_call.1} parent=35 // pred_fallthru
          _
        %s290 = sand.u32 %s35, 1
        %s291 = scalar_lea.sflag [#allocation4], %s290
        %s292 = sand.u32 %s35, 1
        %s293 = smul.addr %s292, 8
        %s294 = scalar_lea.vmem [#allocation3], %s293
        %p295 = pneg %p48
        %p296 = pneg %p45
        %s297 = sand.u32 %s27, 1
        %s298 = scalar_lea.sflag [#allocation7], %s297
        %s299 = sand.u32 %s61, 1
        %s300 = smul.addr %s299, 2
        %s301 = scalar_lea.vmem [#allocation6], %s300
        %p302 = pneg %p74
        %p303 = pneg %p71
        %s304 = sand.u32 %s27, 1
        %s305 = scalar_lea.sflag [#allocation7], %s304
        %s306 = sand.u32 %s87, 1
        %s307 = smul.addr %s306, 24
        %s308 = scalar_lea.vmem [#allocation8], %s307
        %p309 = pneg %p100
        %p310 = pneg %p97
        %s311 = sand.u32 %s113, 1
        %s312 = scalar_lea.sflag [#allocation10], %s311
        %s313 = sand.u32 %s113, 1
        %s314 = smul.addr %s313, 24
        %s315 = scalar_lea.vmem [#allocation9], %s314
        %p316 = pneg %p126
        %p317 = pneg %p123
        %p318 = pneg %p152
        %p319 = pneg %p149
        %s320 = sand.u32 %s139, 1
        %s321 = scalar_lea.sflag [#allocation5], %s320
        %s322 = sand.u32 %s139, 1
        %s323 = smul.addr %s322, 24
        %s324 = scalar_lea.vmem [#allocation11], %s323
        %v325 = vld [vmem:[%s258] sm:$0xff]
        %326 = vst [vmem:[#allocation2 + $0x1] sm:$0xff] %v325
        %v327 = vld [vmem:[%s267] sm:$0x1]
        %328 = vst [vmem:[#allocation2] sm:$0x1] %v327
        %v329 = vld [vmem:[%s267 + $0x1] sm:$0x1]
        %330 = vst [vmem:[#allocation2 + $0x9] sm:$0x1] %v329
        %v331 = vld [vmem:[#allocation2] sm:$0xff]
        %v332 = vld [vmem:[#allocation2 + $0x8] sm:$0x3]
        %vm335 = vcmask 1046528
        %v336 = vrot.slane %v331, 1
        %v337 = vrot.slane %v332, 1
        %v338 = vsel %vm335, %v336, %v337
        %v340 = vadd.f32 %v331, %v338
        %vm341 = vcmask 1045504
        %v342 = vrot.slane %v331, 2
        %v343 = vrot.slane %v332, 2
        %v344 = vsel %vm341, %v342, %v343
        %v346 = vadd.f32 %v340, %v344
        %348 = vrot.lane.b32.xlu0 %v346, 127
        %v349 = vpop.permute.xlu0 %348
        %v351 = vadd.f32 %v346, %v349
        %352 = vrot.lane.b32.xlu0 %v346, 126
        %v353 = vpop.permute.xlu0 %352
        %v355 = vadd.f32 %v351, %v353
        %v356 = vld [vmem:[%s276] sm:$0xff]
        %v357 = vld [vmem:[%s276 + $0x8] sm:$0xff]
        %v358 = vld [vmem:[%s276 + $0x10] sm:$0xff]
        %v359 = vld [vmem:[%s285] sm:$0xff]
        %v360 = vld [vmem:[%s285 + $0x8] sm:$0xff]
        %v361 = vld [vmem:[%s285 + $0x10] sm:$0xff]
        %v362 = vmul.f32 %v355, 28.333334
        %v363 = vmul.f32 %v359, 255.0
        %v364 = vmul.f32 %v360, 255.0
        %v365 = vmul.f32 %v361, 255.0
        %v366 = vsub.f32 %v356, %v359
        %v367 = vsub.f32 %v357, %v360
        %v368 = vsub.f32 %v358, %v361
        %v369 = vmul.f32 %v362, %v366
        %v370 = vmul.f32 %v362, %v367
        %v371 = vmul.f32 %v362, %v368
        %v372 = vadd.f32 %v363, %v369
        %v373 = vadd.f32 %v364, %v370
        %v374 = vadd.f32 %v365, %v371
        %vm375 = vcmask 130048
        %376 = vst.msk [vmem:[%s324] sm:$0xff] %vm375, %v372
        %377 = vst.msk [vmem:[%s324 + $0x8] sm:$0xff] %vm375, %v373
        %378 = vst.msk [vmem:[%s324 + $0x10] sm:$0xff] %vm375, %v374
        %s379 = sand.u32 %s139, 1
        %s380 = scalar_lea.sflag [#allocation5], %s379
        %s381 = sand.u32 %s139, 1
        %s382 = smul.addr %s381, 24
        %s383 = scalar_lea.vmem [#allocation11], %s382
        // Predicated region
        $region53: #{tpu_custom_call.1} parent=35 // pred_check
          %p384 = pneg %p149
        $region54: #{tpu_custom_call.1} parent=35 // pred_check_branch
          %386 = sbr.rel (%p384) target = $region56
        $region55: #{tpu_custom_call.1} parent=35 // pred_region
          %s388 = ssub.s32 384, 384
          %389 = vsyncadd %s380, %s388
          %s390 = smul.addr %s27, 128
          %s391 = scalar_lea.hbm %s4, %s390
          %s392 = sshll.u32 %s383, 4
          %s393 = int_to_ptr.vmem [resolvable:$true] %s392
          %398 = dma.vmem_to_hbm [thread:$0]  %s393, 384, %s391, %s380, 128, 256, 8
        $region56: #{tpu_custom_call.1} parent=35 // pred_fallthru
          _
      $region36: #{tpu_custom_call.1} parent=5 // pred_fallthru
        _
      %p399 = scmp.le.s32.totalorder 2, %s22
      // Predicated region
      $region57: #{tpu_custom_call.1} parent=5 // pred_check
        %p400 = pneg %p399
      $region58: #{tpu_custom_call.1} parent=5 // pred_check_branch
        %402 = sbr.rel (%p400) target = $region60
      $region59: #{tpu_custom_call.1} parent=5 // pred_region
        %s403 = ssub.s32 %s22, 2
        // Predicated region
        $region61: #{tpu_custom_call.1} parent=59 // pred_check
          %p404 = pneg %p155
        $region62: #{tpu_custom_call.1} parent=59 // pred_check_branch
          %406 = sbr.rel (%p404) target = $region64
        $region63: #{tpu_custom_call.1} parent=59 // pred_region
          %s407 = sand.u32 %s140, 1
          %s408 = scalar_lea.sflag [#allocation5], %s407
          %s409 = sand.u32 %s140, 1
          %s410 = smul.addr %s409, 24
          %s411 = scalar_lea.vmem [#allocation11], %s410
          %412 = dma.done %s408, 384
        $region64: #{tpu_custom_call.1} parent=59 // pred_fallthru
          _
      $region60: #{tpu_custom_call.1} parent=5 // pred_fallthru
        _
    $region6: #{tpu_custom_call.1} parent=1 // loop_footer
      %s26 = sadd.s32 1, %s22
    $region7: #{tpu_custom_call.1} parent=1 // loop_footer_branch
      %21 = sbr.rel target = $region3
    $region8: #{tpu_custom_call.1} parent=1 // loop_exit
      _
    %413 = vsyncpa [#allocation4], 1
    %s414 = scalar_lea.sflag [#allocation4], 1
    %415 = vsyncpa %s414, 1
    %416 = vsyncpa [#allocation7], 1
    %s417 = scalar_lea.sflag [#allocation7], 1
    %418 = vsyncpa %s417, 1
    %419 = vsyncpa [#allocation10], 1
    %s420 = scalar_lea.sflag [#allocation10], 1
    %421 = vsyncpa %s420, 1
    %422 = vsyncpa [#allocation5], 1
    %s423 = scalar_lea.sflag [#allocation5], 1
    %424 = vsyncpa %s423, 1

</llo_original>
